<compile_context>
chip_gen: v5e
topology: v5e:2x2
jax: 0.10.0
libtpu: 0.0.40
codegen_flags: <defaults>
</compile_context>

<pallas_src>
import math
import jax
import jax.numpy as jnp
from jax import lax
from jax.experimental import pallas as pl
from jax.experimental.pallas import tpu as pltpu


# ---------------------------------------------------------------------------
# Kernel
# ---------------------------------------------------------------------------
def double_conv_kernel(x_ref, w1_ref, b1_ref, w2_ref, b2_ref, o_ref,
                       xrow_ref, yrow_ref):
    # x_ref:    (Bblk, H, W*Cin)       lane-dense input slab (block of images)
    # w1_ref:   (3, W*Cin,  W*Cmid)    banded conv1 weights, one matrix per kh
    # b1_ref:   (1, W*Cmid)            bias tiled across w
    # w2_ref:   (3, W*Cmid, W*Cout)    banded conv2 weights
    # b2_ref:   (1, W*Cout)
    # o_ref:    (Bblk, H, W*Cout)      lane-dense output slab
    # xrow_ref: (Bblk, H+2, W*Cin)     VMEM scratch, H halo rows = conv1 padding
    # yrow_ref: (Bblk, H+2, W*Cmid)    VMEM scratch, H halo rows = conv2 padding
    bblk, H, wcin = x_ref.shape
    wcmid = b1_ref.shape[-1]

    zero_in = jnp.zeros((1, wcin), jnp.float32)
    zero_mid = jnp.zeros((1, wcmid), jnp.float32)

    def conv3x3_relu(rows_ref, b, wband_ref, bias_ref):
        # out[h] = relu( sum_kh rows[h+kh] @ Wband[kh] + bias ); the kw taps and
        # the W-direction zero padding are inside the banded matrices, so no
        # lane shifts, concats or reshapes are needed.
        acc = jnp.dot(rows_ref[b, 0:H, :], wband_ref[0],
                      preferred_element_type=jnp.float32)
        acc += jnp.dot(rows_ref[b, 1:H + 1, :], wband_ref[1],
                       preferred_element_type=jnp.float32)
        acc += jnp.dot(rows_ref[b, 2:H + 2, :], wband_ref[2],
                       preferred_element_type=jnp.float32)
        return jnp.maximum(acc + bias_ref[...], 0.0)

    for b in range(bblk):                      # static, unrolled over images in block
        # ---- stage 0: H-padded input rows (halo-only zeroing, aligned store) ----
        xrow_ref[b, 0:1, :] = zero_in
        xrow_ref[b, H + 1:H + 2, :] = zero_in
        xrow_ref[b, 1:H + 1, :] = x_ref[b]

        # ---- stage 1: conv1 + ReLU; intermediate stays in VMEM ----
        y = conv3x3_relu(xrow_ref, b, w1_ref, b1_ref)      # (H, W*Cmid)
        yrow_ref[b, 0:1, :] = zero_mid
        yrow_ref[b, H + 1:H + 2, :] = zero_mid
        yrow_ref[b, 1:H + 1, :] = y

        # ---- stage 2: conv2 + ReLU; dense lane-aligned output store ----
        z = conv3x3_relu(yrow_ref, b, w2_ref, b2_ref)      # (H, W*Cout)
        o_ref[b] = z.astype(o_ref.dtype)


# ---------------------------------------------------------------------------
# Constant (hoistable) weight preparation
# ---------------------------------------------------------------------------
def band_weights(w, width):
    """(3,3,Cin,Cout) conv weights -> (3, width*Cin, width*Cout) banded matrices.

    M[kh][wi*Cin+ci, wo*Cout+co] = w[kh, wi-wo+1, ci, co] when |wi-wo| <= 1,
    else 0 — so `rows[h+kh] @ M[kh]` summed over kh realises the 3x3 conv with
    the W-direction zero padding folded into the band structure.
    """
    cin, cout = w.shape[2], w.shape[3]
    wi = jnp.arange(width)[:, None]
    wo = jnp.arange(width)[None, :]
    kw = wi - wo + 1                                        # (W, W)
    valid = (kw >= 0) & (kw < 3)
    blocks = w[:, jnp.where(valid, kw, 0)]                  # (3, W, W, Cin, Cout)
    blocks = blocks * valid[None, :, :, None, None].astype(w.dtype)
    return blocks.transpose(0, 1, 3, 2, 4).reshape(3, width * cin, width * cout)


def prepare_double_conv(params, width):
    """One-time prep: banded weight matrices + lane-tiled biases (hoist out of hot path)."""
    (w1, b1), (w2, b2) = params
    cmid, cout = w1.shape[-1], w2.shape[-1]
    return (band_weights(w1, width),
            jnp.tile(b1, width).reshape(1, width * cmid),
            band_weights(w2, width),
            jnp.tile(b2, width).reshape(1, width * cout))


# ---------------------------------------------------------------------------
# pallas_call wrapper
# ---------------------------------------------------------------------------
def _is_two_core_chip():
    try:
        return "v7" in jax.devices()[0].device_kind.lower()
    except Exception:  # pragma: no cover
        return False


def double_conv_pallas(x_nhwc, prepared):
    w1_band, b1_row, w2_band, b2_row = prepared
    B, H, W, Cin = x_nhwc.shape
    wcin, wcmid, wcout = W * Cin, b1_row.shape[-1], b2_row.shape[-1]
    Cout = wcout // W

    x_slab = x_nhwc.reshape(B, H, wcin)                     # free contiguous reshape

    # v7x has 2 TensorCores -> shard the batch over 2 parallel grid steps.
    # v5e/v6e have 1 TC -> fold the whole batch into a single fat step
    # (per-grid-step overhead ~0.35us dominates at these tiny shapes).
    num_steps = 2 if (B % 2 == 0 and B >= 2 and _is_two_core_chip()) else 1
    bblk = B // num_steps

    out_slab = pl.pallas_call(
        double_conv_kernel,
        out_shape=jax.ShapeDtypeStruct((B, H, wcout), jnp.float32),
        grid=(num_steps,),
        in_specs=[
            pl.BlockSpec((bblk, H, wcin), lambda s: (s, 0, 0)),
            pl.BlockSpec((3, wcin, wcmid), lambda s: (0, 0, 0)),
            pl.BlockSpec((1, wcmid), lambda s: (0, 0)),
            pl.BlockSpec((3, wcmid, wcout), lambda s: (0, 0, 0)),
            pl.BlockSpec((1, wcout), lambda s: (0, 0)),
        ],
        out_specs=pl.BlockSpec((bblk, H, wcout), lambda s: (s, 0, 0)),
        scratch_shapes=[
            pltpu.VMEM((bblk, H + 2, wcin), jnp.float32),
            pltpu.VMEM((bblk, H + 2, wcmid), jnp.float32),
        ],
        compiler_params=pltpu.CompilerParams(dimension_semantics=("parallel",)),
    )(x_slab, w1_band, b1_row, w2_band, b2_row)

    return out_slab.reshape(B, H, W, Cout)                  # free contiguous reshape


def double_conv_forward(x_nchw, prepared):
    # NCHW interface to match the PyTorch module; compute is lane-dense NHWC-slab.
    x = jnp.transpose(x_nchw, (0, 2, 3, 1))                 # NCHW -> NHWC
    y = double_conv_pallas(x, prepared)
    return jnp.transpose(y, (0, 3, 1, 2))                   # NHWC -> NCHW


# ---------------------------------------------------------------------------
# Params / reference / demo
# ---------------------------------------------------------------------------
def init_conv_params(key, cin, cout):
    """Deterministic init mimicking PyTorch Conv2d default (uniform +/- 1/sqrt(fan_in))."""
    kw_key, kb_key = jax.random.split(key)
    fan_in = cin * 3 * 3
    bound = 1.0 / math.sqrt(fan_in)
    w = jax.random.uniform(kw_key, (3, 3, cin, cout), jnp.float32, -bound, bound)
    b = jax.random.uniform(kb_key, (cout,), jnp.float32, -bound, bound)
    return w, b


def _reference(x_nchw, params):
    # Pure-JAX reference (NCHW conv) for correctness check.
    out = x_nchw
    for (w, b) in params:
        w_oihw = jnp.transpose(w, (3, 2, 0, 1))             # (3,3,Cin,Cout) -> (Cout,Cin,3,3)
        out = lax.conv_general_dilated(
            out, w_oihw, window_strides=(1, 1), padding=((1, 1), (1, 1)),
            dimension_numbers=("NCHW", "OIHW", "NCHW"))
        out = jnp.maximum(out + b.reshape(1, -1, 1, 1), 0.0)
    return out


if __name__ == "__main__":
    key = jax.random.PRNGKey(0)
    kx, k1, k2 = jax.random.split(key, 3)

    B, Cin, Cout, H, W = 2, 4, 8, 16, 16
    x = jax.random.normal(kx, (B, Cin, H, W), jnp.float32)
    params = (init_conv_params(k1, Cin, Cout), init_conv_params(k2, Cout, Cout))

    prepared = prepare_double_conv(params, W)   # one-time, hoisted out of per-call path
    fwd = jax.jit(double_conv_forward)

    out = jax.block_until_ready(fwd(x, prepared))

    ref = _reference(x, params)
    assert out.shape == (B, Cout, H, W)
    assert jnp.allclose(out, ref, atol=1e-4, rtol=1e-4), "mismatch vs reference conv"

    print("KERNEL_OK")
</pallas_src>

<mosaic_0001>
module attributes {stable_mosaic.version = 11 : i64} {
  func.func @double_conv_kernel(%arg0: i32, %arg1: memref<2x16x64xf32, #tpu.memory_space<vmem>>, %arg2: memref<3x64x128xf32, #tpu.memory_space<vmem>>, %arg3: memref<1x128xf32, #tpu.memory_space<vmem>>, %arg4: memref<3x128x128xf32, #tpu.memory_space<vmem>>, %arg5: memref<1x128xf32, #tpu.memory_space<vmem>>, %arg6: memref<2x16x128xf32, #tpu.memory_space<vmem>>, %arg7: memref<2x18x64xf32, #tpu.memory_space<vmem>>, %arg8: memref<2x18x128xf32, #tpu.memory_space<vmem>>) attributes {dimension_semantics = [#tpu.dimension_semantics<parallel>], iteration_bounds = array<i64: 1>, scalar_prefetch = 0 : i64, scratch_operands = 2 : i64, tpu.core_type = #tpu.core_type<tc>, window_params = [{transform_indices = @transform_0, window_bounds = array<i64: 2, 16, 64>}, {pipeline_mode = #tpu.pipeline_mode<synchronous>, transform_indices = @transform_1, window_bounds = array<i64: 3, 64, 128>}, {pipeline_mode = #tpu.pipeline_mode<synchronous>, transform_indices = @transform_2, window_bounds = array<i64: 1, 128>}, {pipeline_mode = #tpu.pipeline_mode<synchronous>, transform_indices = @transform_3, window_bounds = array<i64: 3, 128, 128>}, {pipeline_mode = #tpu.pipeline_mode<synchronous>, transform_indices = @transform_4, window_bounds = array<i64: 1, 128>}, {transform_indices = @transform_5, window_bounds = array<i64: 2, 16, 128>}]} {
    %cst = arith.constant 0.000000e+00 : f32
    %0 = vector.broadcast %cst : f32 to vector<1x64xf32>
    %cst_0 = arith.constant 0.000000e+00 : f32
    %1 = vector.broadcast %cst_0 : f32 to vector<1x128xf32>
    %c0 = arith.constant 0 : index
    %c0_1 = arith.constant 0 : index
    %c0_2 = arith.constant 0 : index
    %2 = vector.load %arg7[%c0, %c0_1, %c0_2] : memref<2x18x64xf32, #tpu.memory_space<vmem>>, vector<1x1x64xf32>
    %3 = vector.shape_cast %2 : vector<1x1x64xf32> to vector<1x64xf32>
    %4 = vector.shape_cast %0 : vector<1x64xf32> to vector<1x1x64xf32>
    tpu.vector_store %arg7[%c0, %c0_1, %c0_2], %4 {strides = array<i32>} : memref<2x18x64xf32, #tpu.memory_space<vmem>>, vector<1x1x64xf32>,
    %c0_3 = arith.constant 0 : index
    %c17 = arith.constant 17 : index
    %c0_4 = arith.constant 0 : index
    %5 = vector.load %arg7[%c0_3, %c17, %c0_4] : memref<2x18x64xf32, #tpu.memory_space<vmem>>, vector<1x1x64xf32>
    %6 = vector.shape_cast %5 : vector<1x1x64xf32> to vector<1x64xf32>
    %7 = vector.shape_cast %0 : vector<1x64xf32> to vector<1x1x64xf32>
    tpu.vector_store %arg7[%c0_3, %c17, %c0_4], %7 {strides = array<i32>} : memref<2x18x64xf32, #tpu.memory_space<vmem>>, vector<1x1x64xf32>,
    %c0_5 = arith.constant 0 : index
    %c0_6 = arith.constant 0 : index
    %c0_7 = arith.constant 0 : index
    %8 = vector.load %arg1[%c0_5, %c0_6, %c0_7] : memref<2x16x64xf32, #tpu.memory_space<vmem>>, vector<1x16x64xf32>
    %9 = vector.shape_cast %8 : vector<1x16x64xf32> to vector<16x64xf32>
    %c0_8 = arith.constant 0 : index
    %c1 = arith.constant 1 : index
    %c0_9 = arith.constant 0 : index
    %10 = vector.load %arg7[%c0_8, %c1, %c0_9] : memref<2x18x64xf32, #tpu.memory_space<vmem>>, vector<1x16x64xf32>
    %11 = vector.shape_cast %10 : vector<1x16x64xf32> to vector<16x64xf32>
    %12 = vector.shape_cast %9 : vector<16x64xf32> to vector<1x16x64xf32>
    tpu.vector_store %arg7[%c0_8, %c1, %c0_9], %12 {strides = array<i32>} : memref<2x18x64xf32, #tpu.memory_space<vmem>>, vector<1x16x64xf32>,
    %c0_10 = arith.constant 0 : index
    %c0_11 = arith.constant 0 : index
    %c0_12 = arith.constant 0 : index
    %13 = vector.load %arg7[%c0_10, %c0_11, %c0_12] : memref<2x18x64xf32, #tpu.memory_space<vmem>>, vector<1x16x64xf32>
    %14 = vector.shape_cast %13 : vector<1x16x64xf32> to vector<16x64xf32>
    %c0_13 = arith.constant 0 : index
    %c0_14 = arith.constant 0 : index
    %c0_15 = arith.constant 0 : index
    %15 = vector.load %arg2[%c0_13, %c0_14, %c0_15] : memref<3x64x128xf32, #tpu.memory_space<vmem>>, vector<1x64x128xf32>
    %16 = vector.shape_cast %15 : vector<1x64x128xf32> to vector<64x128xf32>
    %cst_16 = arith.constant dense<0.000000e+00> : vector<16x128xf32>
    %17 = tpu.matmul %14, %16, %cst_16 {dimension_numbers = #tpu.dot_dimension_numbers<[1], [0], [0], [1], [0, 0, 1, 1], [], []>} : vector<16x64xf32>, vector<64x128xf32>, vector<16x128xf32> -> vector<16x128xf32>
    %c0_17 = arith.constant 0 : index
    %c1_18 = arith.constant 1 : index
    %c0_19 = arith.constant 0 : index
    %18 = vector.load %arg7[%c0_17, %c1_18, %c0_19] : memref<2x18x64xf32, #tpu.memory_space<vmem>>, vector<1x16x64xf32>
    %19 = vector.shape_cast %18 : vector<1x16x64xf32> to vector<16x64xf32>
    %c1_20 = arith.constant 1 : index
    %c0_21 = arith.constant 0 : index
    %c0_22 = arith.constant 0 : index
    %20 = vector.load %arg2[%c1_20, %c0_21, %c0_22] : memref<3x64x128xf32, #tpu.memory_space<vmem>>, vector<1x64x128xf32>
    %21 = vector.shape_cast %20 : vector<1x64x128xf32> to vector<64x128xf32>
    %cst_23 = arith.constant dense<0.000000e+00> : vector<16x128xf32>
    %22 = tpu.matmul %19, %21, %cst_23 {dimension_numbers = #tpu.dot_dimension_numbers<[1], [0], [0], [1], [0, 0, 1, 1], [], []>} : vector<16x64xf32>, vector<64x128xf32>, vector<16x128xf32> -> vector<16x128xf32>
    %23 = arith.addf %17, %22 : vector<16x128xf32>
    %c0_24 = arith.constant 0 : index
    %c2 = arith.constant 2 : index
    %c0_25 = arith.constant 0 : index
    %24 = vector.load %arg7[%c0_24, %c2, %c0_25] : memref<2x18x64xf32, #tpu.memory_space<vmem>>, vector<1x16x64xf32>
    %25 = vector.shape_cast %24 : vector<1x16x64xf32> to vector<16x64xf32>
    %c2_26 = arith.constant 2 : index
    %c0_27 = arith.constant 0 : index
    %c0_28 = arith.constant 0 : index
    %26 = vector.load %arg2[%c2_26, %c0_27, %c0_28] : memref<3x64x128xf32, #tpu.memory_space<vmem>>, vector<1x64x128xf32>
    %27 = vector.shape_cast %26 : vector<1x64x128xf32> to vector<64x128xf32>
    %cst_29 = arith.constant dense<0.000000e+00> : vector<16x128xf32>
    %28 = tpu.matmul %25, %27, %cst_29 {dimension_numbers = #tpu.dot_dimension_numbers<[1], [0], [0], [1], [0, 0, 1, 1], [], []>} : vector<16x64xf32>, vector<64x128xf32>, vector<16x128xf32> -> vector<16x128xf32>
    %29 = arith.addf %23, %28 : vector<16x128xf32>
    %c0_30 = arith.constant 0 : index
    %c0_31 = arith.constant 0 : index
    %30 = vector.load %arg3[%c0_30, %c0_31] : memref<1x128xf32, #tpu.memory_space<vmem>>, vector<1x128xf32>
    %31 = vector.broadcast %30 : vector<1x128xf32> to vector<16x128xf32>
    %32 = arith.addf %29, %31 : vector<16x128xf32>
    %cst_32 = arith.constant 0.000000e+00 : f32
    %33 = vector.broadcast %cst_32 : f32 to vector<16x128xf32>
    %34 = arith.maximumf %32, %33 : vector<16x128xf32>
    %c0_33 = arith.constant 0 : index
    %c0_34 = arith.constant 0 : index
    %c0_35 = arith.constant 0 : index
    %35 = vector.load %arg8[%c0_33, %c0_34, %c0_35] : memref<2x18x128xf32, #tpu.memory_space<vmem>>, vector<1x1x128xf32>
    %36 = vector.shape_cast %35 : vector<1x1x128xf32> to vector<1x128xf32>
    %37 = vector.shape_cast %1 : vector<1x128xf32> to vector<1x1x128xf32>
    tpu.vector_store %arg8[%c0_33, %c0_34, %c0_35], %37 {strides = array<i32>} : memref<2x18x128xf32, #tpu.memory_space<vmem>>, vector<1x1x128xf32>,
    %c0_36 = arith.constant 0 : index
    %c17_37 = arith.constant 17 : index
    %c0_38 = arith.constant 0 : index
    %38 = vector.load %arg8[%c0_36, %c17_37, %c0_38] : memref<2x18x128xf32, #tpu.memory_space<vmem>>, vector<1x1x128xf32>
    %39 = vector.shape_cast %38 : vector<1x1x128xf32> to vector<1x128xf32>
    %40 = vector.shape_cast %1 : vector<1x128xf32> to vector<1x1x128xf32>
    tpu.vector_store %arg8[%c0_36, %c17_37, %c0_38], %40 {strides = array<i32>} : memref<2x18x128xf32, #tpu.memory_space<vmem>>, vector<1x1x128xf32>,
    %c0_39 = arith.constant 0 : index
    %c1_40 = arith.constant 1 : index
    %c0_41 = arith.constant 0 : index
    %41 = vector.load %arg8[%c0_39, %c1_40, %c0_41] : memref<2x18x128xf32, #tpu.memory_space<vmem>>, vector<1x16x128xf32>
    %42 = vector.shape_cast %41 : vector<1x16x128xf32> to vector<16x128xf32>
    %43 = vector.shape_cast %34 : vector<16x128xf32> to vector<1x16x128xf32>
    tpu.vector_store %arg8[%c0_39, %c1_40, %c0_41], %43 {strides = array<i32>} : memref<2x18x128xf32, #tpu.memory_space<vmem>>, vector<1x16x128xf32>,
    %c0_42 = arith.constant 0 : index
    %c0_43 = arith.constant 0 : index
    %c0_44 = arith.constant 0 : index
    %44 = vector.load %arg8[%c0_42, %c0_43, %c0_44] : memref<2x18x128xf32, #tpu.memory_space<vmem>>, vector<1x16x128xf32>
    %45 = vector.shape_cast %44 : vector<1x16x128xf32> to vector<16x128xf32>
    %c0_45 = arith.constant 0 : index
    %c0_46 = arith.constant 0 : index
    %c0_47 = arith.constant 0 : index
    %46 = vector.load %arg4[%c0_45, %c0_46, %c0_47] : memref<3x128x128xf32, #tpu.memory_space<vmem>>, vector<1x128x128xf32>
    %47 = vector.shape_cast %46 : vector<1x128x128xf32> to vector<128x128xf32>
    %cst_48 = arith.constant dense<0.000000e+00> : vector<16x128xf32>
    %48 = tpu.matmul %45, %47, %cst_48 {dimension_numbers = #tpu.dot_dimension_numbers<[1], [0], [0], [1], [0, 0, 1, 1], [], []>} : vector<16x128xf32>, vector<128x128xf32>, vector<16x128xf32> -> vector<16x128xf32>
    %c0_49 = arith.constant 0 : index
    %c1_50 = arith.constant 1 : index
    %c0_51 = arith.constant 0 : index
    %49 = vector.load %arg8[%c0_49, %c1_50, %c0_51] : memref<2x18x128xf32, #tpu.memory_space<vmem>>, vector<1x16x128xf32>
    %50 = vector.shape_cast %49 : vector<1x16x128xf32> to vector<16x128xf32>
    %c1_52 = arith.constant 1 : index
    %c0_53 = arith.constant 0 : index
    %c0_54 = arith.constant 0 : index
    %51 = vector.load %arg4[%c1_52, %c0_53, %c0_54] : memref<3x128x128xf32, #tpu.memory_space<vmem>>, vector<1x128x128xf32>
    %52 = vector.shape_cast %51 : vector<1x128x128xf32> to vector<128x128xf32>
    %cst_55 = arith.constant dense<0.000000e+00> : vector<16x128xf32>
    %53 = tpu.matmul %50, %52, %cst_55 {dimension_numbers = #tpu.dot_dimension_numbers<[1], [0], [0], [1], [0, 0, 1, 1], [], []>} : vector<16x128xf32>, vector<128x128xf32>, vector<16x128xf32> -> vector<16x128xf32>
    %54 = arith.addf %48, %53 : vector<16x128xf32>
    %c0_56 = arith.constant 0 : index
    %c2_57 = arith.constant 2 : index
    %c0_58 = arith.constant 0 : index
    %55 = vector.load %arg8[%c0_56, %c2_57, %c0_58] : memref<2x18x128xf32, #tpu.memory_space<vmem>>, vector<1x16x128xf32>
    %56 = vector.shape_cast %55 : vector<1x16x128xf32> to vector<16x128xf32>
    %c2_59 = arith.constant 2 : index
    %c0_60 = arith.constant 0 : index
    %c0_61 = arith.constant 0 : index
    %57 = vector.load %arg4[%c2_59, %c0_60, %c0_61] : memref<3x128x128xf32, #tpu.memory_space<vmem>>, vector<1x128x128xf32>
    %58 = vector.shape_cast %57 : vector<1x128x128xf32> to vector<128x128xf32>
    %cst_62 = arith.constant dense<0.000000e+00> : vector<16x128xf32>
    %59 = tpu.matmul %56, %58, %cst_62 {dimension_numbers = #tpu.dot_dimension_numbers<[1], [0], [0], [1], [0, 0, 1, 1], [], []>} : vector<16x128xf32>, vector<128x128xf32>, vector<16x128xf32> -> vector<16x128xf32>
    %60 = arith.addf %54, %59 : vector<16x128xf32>
    %c0_63 = arith.constant 0 : index
    %c0_64 = arith.constant 0 : index
    %61 = vector.load %arg5[%c0_63, %c0_64] : memref<1x128xf32, #tpu.memory_space<vmem>>, vector<1x128xf32>
    %62 = vector.broadcast %61 : vector<1x128xf32> to vector<16x128xf32>
    %63 = arith.addf %60, %62 : vector<16x128xf32>
    %cst_65 = arith.constant 0.000000e+00 : f32
    %64 = vector.broadcast %cst_65 : f32 to vector<16x128xf32>
    %65 = arith.maximumf %63, %64 : vector<16x128xf32>
    %c0_66 = arith.constant 0 : index
    %c0_67 = arith.constant 0 : index
    %c0_68 = arith.constant 0 : index
    %66 = vector.load %arg6[%c0_66, %c0_67, %c0_68] : memref<2x16x128xf32, #tpu.memory_space<vmem>>, vector<1x16x128xf32>
    %67 = vector.shape_cast %66 : vector<1x16x128xf32> to vector<16x128xf32>
    %68 = vector.shape_cast %65 : vector<16x128xf32> to vector<1x16x128xf32>
    tpu.vector_store %arg6[%c0_66, %c0_67, %c0_68], %68 {strides = array<i32>} : memref<2x16x128xf32, #tpu.memory_space<vmem>>, vector<1x16x128xf32>,
    %c1_69 = arith.constant 1 : index
    %c0_70 = arith.constant 0 : index
    %c0_71 = arith.constant 0 : index
    %69 = vector.load %arg7[%c1_69, %c0_70, %c0_71] : memref<2x18x64xf32, #tpu.memory_space<vmem>>, vector<1x1x64xf32>
    %70 = vector.shape_cast %69 : vector<1x1x64xf32> to vector<1x64xf32>
    %71 = vector.shape_cast %0 : vector<1x64xf32> to vector<1x1x64xf32>
    tpu.vector_store %arg7[%c1_69, %c0_70, %c0_71], %71 {strides = array<i32>} : memref<2x18x64xf32, #tpu.memory_space<vmem>>, vector<1x1x64xf32>,
    %c1_72 = arith.constant 1 : index
    %c17_73 = arith.constant 17 : index
    %c0_74 = arith.constant 0 : index
    %72 = vector.load %arg7[%c1_72, %c17_73, %c0_74] : memref<2x18x64xf32, #tpu.memory_space<vmem>>, vector<1x1x64xf32>
    %73 = vector.shape_cast %72 : vector<1x1x64xf32> to vector<1x64xf32>
    %74 = vector.shape_cast %0 : vector<1x64xf32> to vector<1x1x64xf32>
    tpu.vector_store %arg7[%c1_72, %c17_73, %c0_74], %74 {strides = array<i32>} : memref<2x18x64xf32, #tpu.memory_space<vmem>>, vector<1x1x64xf32>,
    %c1_75 = arith.constant 1 : index
    %c0_76 = arith.constant 0 : index
    %c0_77 = arith.constant 0 : index
    %75 = vector.load %arg1[%c1_75, %c0_76, %c0_77] : memref<2x16x64xf32, #tpu.memory_space<vmem>>, vector<1x16x64xf32>
    %76 = vector.shape_cast %75 : vector<1x16x64xf32> to vector<16x64xf32>
    %c1_78 = arith.constant 1 : index
    %c1_79 = arith.constant 1 : index
    %c0_80 = arith.constant 0 : index
    %77 = vector.load %arg7[%c1_78, %c1_79, %c0_80] : memref<2x18x64xf32, #tpu.memory_space<vmem>>, vector<1x16x64xf32>
    %78 = vector.shape_cast %77 : vector<1x16x64xf32> to vector<16x64xf32>
    %79 = vector.shape_cast %76 : vector<16x64xf32> to vector<1x16x64xf32>
    tpu.vector_store %arg7[%c1_78, %c1_79, %c0_80], %79 {strides = array<i32>} : memref<2x18x64xf32, #tpu.memory_space<vmem>>, vector<1x16x64xf32>,
    %c1_81 = arith.constant 1 : index
    %c0_82 = arith.constant 0 : index
    %c0_83 = arith.constant 0 : index
    %80 = vector.load %arg7[%c1_81, %c0_82, %c0_83] : memref<2x18x64xf32, #tpu.memory_space<vmem>>, vector<1x16x64xf32>
    %81 = vector.shape_cast %80 : vector<1x16x64xf32> to vector<16x64xf32>
    %c0_84 = arith.constant 0 : index
    %c0_85 = arith.constant 0 : index
    %c0_86 = arith.constant 0 : index
    %82 = vector.load %arg2[%c0_84, %c0_85, %c0_86] : memref<3x64x128xf32, #tpu.memory_space<vmem>>, vector<1x64x128xf32>
    %83 = vector.shape_cast %82 : vector<1x64x128xf32> to vector<64x128xf32>
    %cst_87 = arith.constant dense<0.000000e+00> : vector<16x128xf32>
    %84 = tpu.matmul %81, %83, %cst_87 {dimension_numbers = #tpu.dot_dimension_numbers<[1], [0], [0], [1], [0, 0, 1, 1], [], []>} : vector<16x64xf32>, vector<64x128xf32>, vector<16x128xf32> -> vector<16x128xf32>
    %c1_88 = arith.constant 1 : index
    %c1_89 = arith.constant 1 : index
    %c0_90 = arith.constant 0 : index
    %85 = vector.load %arg7[%c1_88, %c1_89, %c0_90] : memref<2x18x64xf32, #tpu.memory_space<vmem>>, vector<1x16x64xf32>
    %86 = vector.shape_cast %85 : vector<1x16x64xf32> to vector<16x64xf32>
    %c1_91 = arith.constant 1 : index
    %c0_92 = arith.constant 0 : index
    %c0_93 = arith.constant 0 : index
    %87 = vector.load %arg2[%c1_91, %c0_92, %c0_93] : memref<3x64x128xf32, #tpu.memory_space<vmem>>, vector<1x64x128xf32>
    %88 = vector.shape_cast %87 : vector<1x64x128xf32> to vector<64x128xf32>
    %cst_94 = arith.constant dense<0.000000e+00> : vector<16x128xf32>
    %89 = tpu.matmul %86, %88, %cst_94 {dimension_numbers = #tpu.dot_dimension_numbers<[1], [0], [0], [1], [0, 0, 1, 1], [], []>} : vector<16x64xf32>, vector<64x128xf32>, vector<16x128xf32> -> vector<16x128xf32>
    %90 = arith.addf %84, %89 : vector<16x128xf32>
    %c1_95 = arith.constant 1 : index
    %c2_96 = arith.constant 2 : index
    %c0_97 = arith.constant 0 : index
    %91 = vector.load %arg7[%c1_95, %c2_96, %c0_97] : memref<2x18x64xf32, #tpu.memory_space<vmem>>, vector<1x16x64xf32>
    %92 = vector.shape_cast %91 : vector<1x16x64xf32> to vector<16x64xf32>
    %c2_98 = arith.constant 2 : index
    %c0_99 = arith.constant 0 : index
    %c0_100 = arith.constant 0 : index
    %93 = vector.load %arg2[%c2_98, %c0_99, %c0_100] : memref<3x64x128xf32, #tpu.memory_space<vmem>>, vector<1x64x128xf32>
    %94 = vector.shape_cast %93 : vector<1x64x128xf32> to vector<64x128xf32>
    %cst_101 = arith.constant dense<0.000000e+00> : vector<16x128xf32>
    %95 = tpu.matmul %92, %94, %cst_101 {dimension_numbers = #tpu.dot_dimension_numbers<[1], [0], [0], [1], [0, 0, 1, 1], [], []>} : vector<16x64xf32>, vector<64x128xf32>, vector<16x128xf32> -> vector<16x128xf32>
    %96 = arith.addf %90, %95 : vector<16x128xf32>
    %c0_102 = arith.constant 0 : index
    %c0_103 = arith.constant 0 : index
    %97 = vector.load %arg3[%c0_102, %c0_103] : memref<1x128xf32, #tpu.memory_space<vmem>>, vector<1x128xf32>
    %98 = vector.broadcast %97 : vector<1x128xf32> to vector<16x128xf32>
    %99 = arith.addf %96, %98 : vector<16x128xf32>
    %cst_104 = arith.constant 0.000000e+00 : f32
    %100 = vector.broadcast %cst_104 : f32 to vector<16x128xf32>
    %101 = arith.maximumf %99, %100 : vector<16x128xf32>
    %c1_105 = arith.constant 1 : index
    %c0_106 = arith.constant 0 : index
    %c0_107 = arith.constant 0 : index
    %102 = vector.load %arg8[%c1_105, %c0_106, %c0_107] : memref<2x18x128xf32, #tpu.memory_space<vmem>>, vector<1x1x128xf32>
    %103 = vector.shape_cast %102 : vector<1x1x128xf32> to vector<1x128xf32>
    %104 = vector.shape_cast %1 : vector<1x128xf32> to vector<1x1x128xf32>
    tpu.vector_store %arg8[%c1_105, %c0_106, %c0_107], %104 {strides = array<i32>} : memref<2x18x128xf32, #tpu.memory_space<vmem>>, vector<1x1x128xf32>,
    %c1_108 = arith.constant 1 : index
    %c17_109 = arith.constant 17 : index
    %c0_110 = arith.constant 0 : index
    %105 = vector.load %arg8[%c1_108, %c17_109, %c0_110] : memref<2x18x128xf32, #tpu.memory_space<vmem>>, vector<1x1x128xf32>
    %106 = vector.shape_cast %105 : vector<1x1x128xf32> to vector<1x128xf32>
    %107 = vector.shape_cast %1 : vector<1x128xf32> to vector<1x1x128xf32>
    tpu.vector_store %arg8[%c1_108, %c17_109, %c0_110], %107 {strides = array<i32>} : memref<2x18x128xf32, #tpu.memory_space<vmem>>, vector<1x1x128xf32>,
    %c1_111 = arith.constant 1 : index
    %c1_112 = arith.constant 1 : index
    %c0_113 = arith.constant 0 : index
    %108 = vector.load %arg8[%c1_111, %c1_112, %c0_113] : memref<2x18x128xf32, #tpu.memory_space<vmem>>, vector<1x16x128xf32>
    %109 = vector.shape_cast %108 : vector<1x16x128xf32> to vector<16x128xf32>
    %110 = vector.shape_cast %101 : vector<16x128xf32> to vector<1x16x128xf32>
    tpu.vector_store %arg8[%c1_111, %c1_112, %c0_113], %110 {strides = array<i32>} : memref<2x18x128xf32, #tpu.memory_space<vmem>>, vector<1x16x128xf32>,
    %c1_114 = arith.constant 1 : index
    %c0_115 = arith.constant 0 : index
    %c0_116 = arith.constant 0 : index
    %111 = vector.load %arg8[%c1_114, %c0_115, %c0_116] : memref<2x18x128xf32, #tpu.memory_space<vmem>>, vector<1x16x128xf32>
    %112 = vector.shape_cast %111 : vector<1x16x128xf32> to vector<16x128xf32>
    %c0_117 = arith.constant 0 : index
    %c0_118 = arith.constant 0 : index
    %c0_119 = arith.constant 0 : index
    %113 = vector.load %arg4[%c0_117, %c0_118, %c0_119] : memref<3x128x128xf32, #tpu.memory_space<vmem>>, vector<1x128x128xf32>
    %114 = vector.shape_cast %113 : vector<1x128x128xf32> to vector<128x128xf32>
    %cst_120 = arith.constant dense<0.000000e+00> : vector<16x128xf32>
    %115 = tpu.matmul %112, %114, %cst_120 {dimension_numbers = #tpu.dot_dimension_numbers<[1], [0], [0], [1], [0, 0, 1, 1], [], []>} : vector<16x128xf32>, vector<128x128xf32>, vector<16x128xf32> -> vector<16x128xf32>
    %c1_121 = arith.constant 1 : index
    %c1_122 = arith.constant 1 : index
    %c0_123 = arith.constant 0 : index
    %116 = vector.load %arg8[%c1_121, %c1_122, %c0_123] : memref<2x18x128xf32, #tpu.memory_space<vmem>>, vector<1x16x128xf32>
    %117 = vector.shape_cast %116 : vector<1x16x128xf32> to vector<16x128xf32>
    %c1_124 = arith.constant 1 : index
    %c0_125 = arith.constant 0 : index
    %c0_126 = arith.constant 0 : index
    %118 = vector.load %arg4[%c1_124, %c0_125, %c0_126] : memref<3x128x128xf32, #tpu.memory_space<vmem>>, vector<1x128x128xf32>
    %119 = vector.shape_cast %118 : vector<1x128x128xf32> to vector<128x128xf32>
    %cst_127 = arith.constant dense<0.000000e+00> : vector<16x128xf32>
    %120 = tpu.matmul %117, %119, %cst_127 {dimension_numbers = #tpu.dot_dimension_numbers<[1], [0], [0], [1], [0, 0, 1, 1], [], []>} : vector<16x128xf32>, vector<128x128xf32>, vector<16x128xf32> -> vector<16x128xf32>
    %121 = arith.addf %115, %120 : vector<16x128xf32>
    %c1_128 = arith.constant 1 : index
    %c2_129 = arith.constant 2 : index
    %c0_130 = arith.constant 0 : index
    %122 = vector.load %arg8[%c1_128, %c2_129, %c0_130] : memref<2x18x128xf32, #tpu.memory_space<vmem>>, vector<1x16x128xf32>
    %123 = vector.shape_cast %122 : vector<1x16x128xf32> to vector<16x128xf32>
    %c2_131 = arith.constant 2 : index
    %c0_132 = arith.constant 0 : index
    %c0_133 = arith.constant 0 : index
    %124 = vector.load %arg4[%c2_131, %c0_132, %c0_133] : memref<3x128x128xf32, #tpu.memory_space<vmem>>, vector<1x128x128xf32>
    %125 = vector.shape_cast %124 : vector<1x128x128xf32> to vector<128x128xf32>
    %cst_134 = arith.constant dense<0.000000e+00> : vector<16x128xf32>
    %126 = tpu.matmul %123, %125, %cst_134 {dimension_numbers = #tpu.dot_dimension_numbers<[1], [0], [0], [1], [0, 0, 1, 1], [], []>} : vector<16x128xf32>, vector<128x128xf32>, vector<16x128xf32> -> vector<16x128xf32>
    %127 = arith.addf %121, %126 : vector<16x128xf32>
    %c0_135 = arith.constant 0 : index
    %c0_136 = arith.constant 0 : index
    %128 = vector.load %arg5[%c0_135, %c0_136] : memref<1x128xf32, #tpu.memory_space<vmem>>, vector<1x128xf32>
    %129 = vector.broadcast %128 : vector<1x128xf32> to vector<16x128xf32>
    %130 = arith.addf %127, %129 : vector<16x128xf32>
    %cst_137 = arith.constant 0.000000e+00 : f32
    %131 = vector.broadcast %cst_137 : f32 to vector<16x128xf32>
    %132 = arith.maximumf %130, %131 : vector<16x128xf32>
    %c1_138 = arith.constant 1 : index
    %c0_139 = arith.constant 0 : index
    %c0_140 = arith.constant 0 : index
    %133 = vector.load %arg6[%c1_138, %c0_139, %c0_140] : memref<2x16x128xf32, #tpu.memory_space<vmem>>, vector<1x16x128xf32>
    %134 = vector.shape_cast %133 : vector<1x16x128xf32> to vector<16x128xf32>
    %135 = vector.shape_cast %132 : vector<16x128xf32> to vector<1x16x128xf32>
    tpu.vector_store %arg6[%c1_138, %c0_139, %c0_140], %135 {strides = array<i32>} : memref<2x16x128xf32, #tpu.memory_space<vmem>>, vector<1x16x128xf32>,
    return
  }
  func.func @transform_0(%arg0: i32) -> (i32, i32, i32) {
    %c0_i32 = arith.constant 0 : i32
    %c0_i32_0 = arith.constant 0 : i32
    %c0_i32_1 = arith.constant 0 : i32
    return %arg0, %c0_i32, %c0_i32_0 : i32, i32, i32
  }
  func.func @transform_1(%arg0: i32) -> (i32, i32, i32) {
    %c0_i32 = arith.constant 0 : i32
    %c0_i32_0 = arith.constant 0 : i32
    %c0_i32_1 = arith.constant 0 : i32
    %c0_i32_2 = arith.constant 0 : i32
    return %c0_i32, %c0_i32_0, %c0_i32_1 : i32, i32, i32
  }
  func.func @transform_2(%arg0: i32) -> (i32, i32) {
    %c0_i32 = arith.constant 0 : i32
    %c0_i32_0 = arith.constant 0 : i32
    %c0_i32_1 = arith.constant 0 : i32
    return %c0_i32, %c0_i32_0 : i32, i32
  }
  func.func @transform_3(%arg0: i32) -> (i32, i32, i32) {
    %c0_i32 = arith.constant 0 : i32
    %c0_i32_0 = arith.constant 0 : i32
    %c0_i32_1 = arith.constant 0 : i32
    %c0_i32_2 = arith.constant 0 : i32
    return %c0_i32, %c0_i32_0, %c0_i32_1 : i32, i32, i32
  }
  func.func @transform_4(%arg0: i32) -> (i32, i32) {
    %c0_i32 = arith.constant 0 : i32
    %c0_i32_0 = arith.constant 0 : i32
    %c0_i32_1 = arith.constant 0 : i32
    return %c0_i32, %c0_i32_0 : i32, i32
  }
  func.func @transform_5(%arg0: i32) -> (i32, i32, i32) {
    %c0_i32 = arith.constant 0 : i32
    %c0_i32_0 = arith.constant 0 : i32
    %c0_i32_1 = arith.constant 0 : i32
    return %arg0, %c0_i32, %c0_i32_0 : i32, i32, i32
  }
}

</mosaic_0001>

<llo_original>
// kernel: double_conv_forward.1
$region0: #{double_conv_forward.1}
  #allocation0 [shape = 'u32[]', space=smem, size = 0x4, offset = 0x4, fixed_abs, tag = 'smem constant byte address 0x4 - core index']
  #allocation1 [shape = 'u32[72,128]{1,0:T(1,128)}', space=vmem, size = 0x9000, scoped, tag = 'internal scratch']
  #allocation2 [shape = 'f32[2,18,64]{2,1,0:T(8,128)}', space=vmem, size = 0x6000, scoped, tag = 'scratch operand']
  #allocation3 [shape = 'f32[2,18,128]{2,1,0:T(8,128)}', space=vmem, size = 0x6000, scoped, tag = 'scratch operand']
  %s0 = inlined_call_operand.vmem [shape: f32[2,16,64], index: 0, kind: input, shape index: {}]
  %s1 = inlined_call_operand.hbm [shape: f32[3,64,128], index: 1, kind: input, shape index: {}]
  %s2 = inlined_call_operand.vmem [shape: f32[1,128], index: 2, kind: input, shape index: {}]
  %s3 = inlined_call_operand.vmem [shape: f32[3,128,128], index: 3, kind: input, shape index: {}]
  %s4 = inlined_call_operand.vmem [shape: f32[1,128], index: 4, kind: input, shape index: {}]
  %s5 = inlined_call_operand.vmem [shape: f32[2,16,128], index: 5, kind: output, shape index: {}]
  %s6 = sld [smem:[#allocation0]]
  $region34: #{double_conv_forward.1} parent=0
    _
  %s8 = ssub.s32 1, %s6
  %s9 = scalar_select 0, %s8, %s6
  $region1: #{double_conv_forward.1} parent=0
    #allocation4 [shape = 'u8[98304]{0}', space=vmem, size = 0x18000, scoped, tag = 'input window, operand 1, single buffered']
    #allocation5 [shape = 's32[1]{0}', space=sflag, size = 0x4, scoped, tag = 'scoped memory for double_conv_forward.1']
    %10 = vsyncpa [#allocation5], 0
    // Predicated region
    $region2: #{double_conv_forward.1} parent=1 // pred_check
      _
    $region3: #{double_conv_forward.1} parent=1 // pred_check_branch
      %12 = sbr.rel (0) target = $region5
    $region4: #{double_conv_forward.1} parent=1 // pred_region
      _
    $region5: #{double_conv_forward.1} parent=1 // pred_fallthru
      _
    // Predicated region
    $region6: #{double_conv_forward.1} parent=1 // pred_check
      _
    $region7: #{double_conv_forward.1} parent=1 // pred_check_branch
      %14 = sbr.rel (0) target = $region9
    $region8: #{double_conv_forward.1} parent=1 // pred_region
      %16 = vsyncadd [#allocation5], 0
      %s17 = sshll.u32 %s1, 4
      %s18 = int_to_ptr.hbm [resolvable:$true] %s17
      %s19 = sshll.u32 [#allocation4], 4
      %s20 = int_to_ptr.vmem [resolvable:$true] %s19
      %25 = dma.hbm_to_vmem [thread:$0]  %s18, 3072, %s20, [#allocation5], 128, 128, 8
    $region9: #{double_conv_forward.1} parent=1 // pred_fallthru
      _
    // Predicated region
    $region10: #{double_conv_forward.1} parent=1 // pred_check
      _
    $region11: #{double_conv_forward.1} parent=1 // pred_check_branch
      %27 = sbr.rel (0) target = $region13
    $region12: #{double_conv_forward.1} parent=1 // pred_region
      _
    $region13: #{double_conv_forward.1} parent=1 // pred_fallthru
      _
    // Predicated region
    $region14: #{double_conv_forward.1} parent=1 // pred_check
      _
    $region15: #{double_conv_forward.1} parent=1 // pred_check_branch
      %29 = sbr.rel (0) target = $region17
    $region16: #{double_conv_forward.1} parent=1 // pred_region
      _
    $region17: #{double_conv_forward.1} parent=1 // pred_fallthru
      _
    // Predicated region
    $region18: #{double_conv_forward.1} parent=1 // pred_check
      _
    $region19: #{double_conv_forward.1} parent=1 // pred_check_branch
      %31 = sbr.rel (0) target = $region21
    $region20: #{double_conv_forward.1} parent=1 // pred_region
      _
    $region21: #{double_conv_forward.1} parent=1 // pred_fallthru
      _
    // Predicated region
    $region22: #{double_conv_forward.1} parent=1 // pred_check
      _
    $region23: #{double_conv_forward.1} parent=1 // pred_check_branch
      %33 = sbr.rel (0) target = $region25
    $region24: #{double_conv_forward.1} parent=1 // pred_region
      %35 = dma.done [#allocation5], 3072
    $region25: #{double_conv_forward.1} parent=1 // pred_fallthru
      _
    %vm36 = vcmask 516096
    %37 = vst.msk [vmem:[#allocation2] sm:$0x1] %vm36, 0.0
    %38 = vst.msk [vmem:[#allocation2 + $0x11] sm:$0x1] %vm36, 0.0
    %v39 = vld [vmem:[%s0] sm:$0xff]
    %v40 = vld [vmem:[%s0 + $0x8] sm:$0xff]
    %vm41 = vcmask 523264
    %42 = vst.msk [vmem:[#allocation2 + $0x1] sm:$0xff] %vm41, %v39
    %43 = vst.msk [vmem:[#allocation2 + $0x9] sm:$0xff] %vm41, %v40
    %v44 = vld [vmem:[#allocation2] sm:$0xff]
    %v45 = vld [vmem:[#allocation2 + $0x8] sm:$0xff]
    %v46 = vld [vmem:[#allocation4] sm:$0xff]
    %v47 = vld [vmem:[#allocation4 + $0x8] sm:$0xff]
    %v48 = vld [vmem:[#allocation4 + $0x10] sm:$0xff]
    %v49 = vld [vmem:[#allocation4 + $0x18] sm:$0xff]
    %v50 = vld [vmem:[#allocation4 + $0x20] sm:$0xff]
    %v51 = vld [vmem:[#allocation4 + $0x28] sm:$0xff]
    %v52 = vld [vmem:[#allocation4 + $0x30] sm:$0xff]
    %v53 = vld [vmem:[#allocation4 + $0x38] sm:$0xff]
    %v54 = vld [vmem:[#allocation2 + $0x1] sm:$0xff]
    %v55 = vld [vmem:[#allocation2 + $0x9] sm:$0xff]
    %s56 = scalar_lea.vmem [#allocation4], 64
    %v57 = vld [vmem:[%s56] sm:$0xff]
    %v58 = vld [vmem:[%s56 + $0x8] sm:$0xff]
    %v59 = vld [vmem:[%s56 + $0x10] sm:$0xff]
    %v60 = vld [vmem:[%s56 + $0x18] sm:$0xff]
    %v61 = vld [vmem:[%s56 + $0x20] sm:$0xff]
    %v62 = vld [vmem:[%s56 + $0x28] sm:$0xff]
    %v63 = vld [vmem:[%s56 + $0x30] sm:$0xff]
    %v64 = vld [vmem:[%s56 + $0x38] sm:$0xff]
    %v66 = vsel %vm41, %v54, 0
    %v69 = vsel %vm41, %v55, 0
    %71 = vmatpush.msra.mxu0 0.0
    %72 = vmatpush.msra.mxu0 0.0
    %73 = vmatpush.msra.mxu0 0.0
    %74 = vmatpush.msra.mxu0 0.0
    %75 = vmatpush.msra.mxu0 0.0
    %76 = vmatpush.msra.mxu0 0.0
    %77 = vmatpush.msra.mxu0 0.0
    %78 = vmatpush.msra.mxu0 0.0
    %79 = vmatpush.msra.mxu0 %v64
    %80 = vmatpush.msra.mxu0 %v63
    %81 = vmatpush.msra.mxu0 %v62
    %82 = vmatpush.msra.mxu0 %v61
    %83 = vmatpush.msra.mxu0 %v60
    %84 = vmatpush.msra.mxu0 %v59
    %85 = vmatpush.msra.mxu0 %v58
    %86 = vmatpush.msra.mxu0 %v57
    %87 = vmatmul.f32.gmra.mxu0 %v66
    %v88 = vpop.f32.mrf.mxu0
    %v89 = vadd.f32 0.0, %v88
    %90 = vmatmul.f32.gmra.mxu0 %v69
    %v91 = vpop.f32.mrf.mxu0
    %v92 = vadd.f32 0.0, %v91
    %93 = vdwg.mxu0
    %v95 = vsel %vm41, %v44, 0
    %v98 = vsel %vm41, %v45, 0
    %100 = vmatpush.msra.mxu0 0.0
    %101 = vmatpush.msra.mxu0 0.0
    %102 = vmatpush.msra.mxu0 0.0
    %103 = vmatpush.msra.mxu0 0.0
    %104 = vmatpush.msra.mxu0 0.0
    %105 = vmatpush.msra.mxu0 0.0
    %106 = vmatpush.msra.mxu0 0.0
    %107 = vmatpush.msra.mxu0 0.0
    %108 = vmatpush.msra.mxu0 %v53
    %109 = vmatpush.msra.mxu0 %v52
    %110 = vmatpush.msra.mxu0 %v51
    %111 = vmatpush.msra.mxu0 %v50
    %112 = vmatpush.msra.mxu0 %v49
    %113 = vmatpush.msra.mxu0 %v48
    %114 = vmatpush.msra.mxu0 %v47
    %115 = vmatpush.msra.mxu0 %v46
    %116 = vmatmul.f32.gmra.mxu0 %v95
    %v117 = vpop.f32.mrf.mxu0
    %v118 = vadd.f32 %v89, %v117
    %119 = vmatmul.f32.gmra.mxu0 %v98
    %v120 = vpop.f32.mrf.mxu0
    %v121 = vadd.f32 %v92, %v120
    %122 = vdwg.mxu0
    %v123 = vld [vmem:[#allocation2 + $0x2] sm:$0xff]
    %v124 = vld [vmem:[#allocation2 + $0xa] sm:$0xff]
    %s125 = scalar_lea.vmem [#allocation4], 128
    %v126 = vld [vmem:[%s125] sm:$0xff]
    %v127 = vld [vmem:[%s125 + $0x8] sm:$0xff]
    %v128 = vld [vmem:[%s125 + $0x10] sm:$0xff]
    %v129 = vld [vmem:[%s125 + $0x18] sm:$0xff]
    %v130 = vld [vmem:[%s125 + $0x20] sm:$0xff]
    %v131 = vld [vmem:[%s125 + $0x28] sm:$0xff]
    %v132 = vld [vmem:[%s125 + $0x30] sm:$0xff]
    %v133 = vld [vmem:[%s125 + $0x38] sm:$0xff]
    %v135 = vsel %vm41, %v123, 0
    %v138 = vsel %vm41, %v124, 0
    %140 = vmatpush.msra.mxu0 0.0
    %141 = vmatpush.msra.mxu0 0.0
    %142 = vmatpush.msra.mxu0 0.0
    %143 = vmatpush.msra.mxu0 0.0
    %144 = vmatpush.msra.mxu0 0.0
    %145 = vmatpush.msra.mxu0 0.0
    %146 = vmatpush.msra.mxu0 0.0
    %147 = vmatpush.msra.mxu0 0.0
    %148 = vmatpush.msra.mxu0 %v133
    %149 = vmatpush.msra.mxu0 %v132
    %150 = vmatpush.msra.mxu0 %v131
    %151 = vmatpush.msra.mxu0 %v130
    %152 = vmatpush.msra.mxu0 %v129
    %153 = vmatpush.msra.mxu0 %v128
    %154 = vmatpush.msra.mxu0 %v127
    %155 = vmatpush.msra.mxu0 %v126
    %156 = vmatmul.f32.gmra.mxu0 %v135
    %v157 = vpop.f32.mrf.mxu0
    %v158 = vadd.f32 0.0, %v157
    %159 = vmatmul.f32.gmra.mxu0 %v138
    %v160 = vpop.f32.mrf.mxu0
    %v161 = vadd.f32 0.0, %v160
    %162 = vdwg.mxu0
    %v163 = vadd.f32 %v118, %v158
    %v164 = vadd.f32 %v121, %v161
    %v165 = vld [vmem:[%s2] sm:$0x1]
    %v167 = vperm.slane %v165, 0
    %v169 = vadd.f32 %v163, %v167
    %v170 = vadd.f32 %v164, %v167
    %v171 = vmax.f32 %v169, 0.0
    %v172 = vmax.f32 %v170, 0.0
    %173 = vst [vmem:[#allocation3] sm:$0x1] 0.0
    %174 = vst [vmem:[#allocation3 + $0x11] sm:$0x1] 0.0
    %175 = vst [vmem:[#allocation3 + $0x1] sm:$0xff] %v171
    %176 = vst [vmem:[#allocation3 + $0x9] sm:$0xff] %v172
    %v177 = vld [vmem:[#allocation3] sm:$0xff]
    %v178 = vld [vmem:[#allocation3 + $0x8] sm:$0xff]
    %v179 = vld [vmem:[%s3] sm:$0xff]
    %v180 = vld [vmem:[%s3 + $0x8] sm:$0xff]
    %v181 = vld [vmem:[%s3 + $0x10] sm:$0xff]
    %v182 = vld [vmem:[%s3 + $0x18] sm:$0xff]
    %v183 = vld [vmem:[%s3 + $0x20] sm:$0xff]
    %v184 = vld [vmem:[%s3 + $0x28] sm:$0xff]
    %v185 = vld [vmem:[%s3 + $0x30] sm:$0xff]
    %v186 = vld [vmem:[%s3 + $0x38] sm:$0xff]
    %v187 = vld [vmem:[%s3 + $0x40] sm:$0xff]
    %v188 = vld [vmem:[%s3 + $0x48] sm:$0xff]
    %v189 = vld [vmem:[%s3 + $0x50] sm:$0xff]
    %v190 = vld [vmem:[%s3 + $0x58] sm:$0xff]
    %v191 = vld [vmem:[%s3 + $0x60] sm:$0xff]
    %v192 = vld [vmem:[%s3 + $0x68] sm:$0xff]
    %v193 = vld [vmem:[%s3 + $0x70] sm:$0xff]
    %v194 = vld [vmem:[%s3 + $0x78] sm:$0xff]
    %v195 = vld [vmem:[#allocation3 + $0x1] sm:$0xff]
    %v196 = vld [vmem:[#allocation3 + $0x9] sm:$0xff]
    %s197 = scalar_lea.vmem %s3, 128
    %v198 = vld [vmem:[%s197] sm:$0xff]
    %v199 = vld [vmem:[%s197 + $0x8] sm:$0xff]
    %v200 = vld [vmem:[%s197 + $0x10] sm:$0xff]
    %v201 = vld [vmem:[%s197 + $0x18] sm:$0xff]
    %v202 = vld [vmem:[%s197 + $0x20] sm:$0xff]
    %v203 = vld [vmem:[%s197 + $0x28] sm:$0xff]
    %v204 = vld [vmem:[%s197 + $0x30] sm:$0xff]
    %v205 = vld [vmem:[%s197 + $0x38] sm:$0xff]
    %v206 = vld [vmem:[%s197 + $0x40] sm:$0xff]
    %v207 = vld [vmem:[%s197 + $0x48] sm:$0xff]
    %v208 = vld [vmem:[%s197 + $0x50] sm:$0xff]
    %v209 = vld [vmem:[%s197 + $0x58] sm:$0xff]
    %v210 = vld [vmem:[%s197 + $0x60] sm:$0xff]
    %v211 = vld [vmem:[%s197 + $0x68] sm:$0xff]
    %v212 = vld [vmem:[%s197 + $0x70] sm:$0xff]
    %v213 = vld [vmem:[%s197 + $0x78] sm:$0xff]
    %214 = vmatpush.msra.mxu0 %v213
    %215 = vmatpush.msra.mxu0 %v212
    %216 = vmatpush.msra.mxu0 %v211
    %217 = vmatpush.msra.mxu0 %v210
    %218 = vmatpush.msra.mxu0 %v209
    %219 = vmatpush.msra.mxu0 %v208
    %220 = vmatpush.msra.mxu0 %v207
    %221 = vmatpush.msra.mxu0 %v206
    %222 = vmatpush.msra.mxu0 %v205
    %223 = vmatpush.msra.mxu0 %v204
    %224 = vmatpush.msra.mxu0 %v203
    %225 = vmatpush.msra.mxu0 %v202
    %226 = vmatpush.msra.mxu0 %v201
    %227 = vmatpush.msra.mxu0 %v200
    %228 = vmatpush.msra.mxu0 %v199
    %229 = vmatpush.msra.mxu0 %v198
    %230 = vmatmul.f32.gmra.mxu0 %v195
    %v231 = vpop.f32.mrf.mxu0
    %v232 = vadd.f32 0.0, %v231
    %233 = vmatmul.f32.gmra.mxu0 %v196
    %v234 = vpop.f32.mrf.mxu0
    %v235 = vadd.f32 0.0, %v234
    %236 = vdwg.mxu0
    %237 = vmatpush.msra.mxu0 %v194
    %238 = vmatpush.msra.mxu0 %v193
    %239 = vmatpush.msra.mxu0 %v192
    %240 = vmatpush.msra.mxu0 %v191
    %241 = vmatpush.msra.mxu0 %v190
    %242 = vmatpush.msra.mxu0 %v189
    %243 = vmatpush.msra.mxu0 %v188
    %244 = vmatpush.msra.mxu0 %v187
    %245 = vmatpush.msra.mxu0 %v186
    %246 = vmatpush.msra.mxu0 %v185
    %247 = vmatpush.msra.mxu0 %v184
    %248 = vmatpush.msra.mxu0 %v183
    %249 = vmatpush.msra.mxu0 %v182
    %250 = vmatpush.msra.mxu0 %v181
    %251 = vmatpush.msra.mxu0 %v180
    %252 = vmatpush.msra.mxu0 %v179
    %253 = vmatmul.f32.gmra.mxu0 %v177
    %v254 = vpop.f32.mrf.mxu0
    %v255 = vadd.f32 %v232, %v254
    %256 = vmatmul.f32.gmra.mxu0 %v178
    %v257 = vpop.f32.mrf.mxu0
    %v258 = vadd.f32 %v235, %v257
    %259 = vdwg.mxu0
    %v260 = vld [vmem:[#allocation3 + $0x2] sm:$0xff]
    %v261 = vld [vmem:[#allocation3 + $0xa] sm:$0xff]
    %s262 = scalar_lea.vmem %s3, 256
    %v263 = vld [vmem:[%s262] sm:$0xff]
    %v264 = vld [vmem:[%s262 + $0x8] sm:$0xff]
    %v265 = vld [vmem:[%s262 + $0x10] sm:$0xff]
    %v266 = vld [vmem:[%s262 + $0x18] sm:$0xff]
    %v267 = vld [vmem:[%s262 + $0x20] sm:$0xff]
    %v268 = vld [vmem:[%s262 + $0x28] sm:$0xff]
    %v269 = vld [vmem:[%s262 + $0x30] sm:$0xff]
    %v270 = vld [vmem:[%s262 + $0x38] sm:$0xff]
    %v271 = vld [vmem:[%s262 + $0x40] sm:$0xff]
    %v272 = vld [vmem:[%s262 + $0x48] sm:$0xff]
    %v273 = vld [vmem:[%s262 + $0x50] sm:$0xff]
    %v274 = vld [vmem:[%s262 + $0x58] sm:$0xff]
    %v275 = vld [vmem:[%s262 + $0x60] sm:$0xff]
    %v276 = vld [vmem:[%s262 + $0x68] sm:$0xff]
    %v277 = vld [vmem:[%s262 + $0x70] sm:$0xff]
    %v278 = vld [vmem:[%s262 + $0x78] sm:$0xff]
    %279 = vmatpush.msra.mxu0 %v278
    %280 = vmatpush.msra.mxu0 %v277
    %281 = vmatpush.msra.mxu0 %v276
    %282 = vmatpush.msra.mxu0 %v275
    %283 = vmatpush.msra.mxu0 %v274
    %284 = vmatpush.msra.mxu0 %v273
    %285 = vmatpush.msra.mxu0 %v272
    %286 = vmatpush.msra.mxu0 %v271
    %287 = vmatpush.msra.mxu0 %v270
    %288 = vmatpush.msra.mxu0 %v269
    %289 = vmatpush.msra.mxu0 %v268
    %290 = vmatpush.msra.mxu0 %v267
    %291 = vmatpush.msra.mxu0 %v266
    %292 = vmatpush.msra.mxu0 %v265
    %293 = vmatpush.msra.mxu0 %v264
    %294 = vmatpush.msra.mxu0 %v263
    %295 = vmatmul.f32.gmra.mxu0 %v260
    %v296 = vpop.f32.mrf.mxu0
    %v297 = vadd.f32 0.0, %v296
    %298 = vmatmul.f32.gmra.mxu0 %v261
    %v299 = vpop.f32.mrf.mxu0
    %v300 = vadd.f32 0.0, %v299
    %301 = vdwg.mxu0
    %v302 = vadd.f32 %v255, %v297
    %v303 = vadd.f32 %v258, %v300
    %v304 = vld [vmem:[%s4] sm:$0x1]
    %v306 = vperm.slane %v304, 0
    %v308 = vadd.f32 %v302, %v306
    %v309 = vadd.f32 %v303, %v306
    %v310 = vmax.f32 %v308, 0.0
    %v311 = vmax.f32 %v309, 0.0
    %312 = vst [vmem:[%s5] sm:$0xff] %v310
    %313 = vst [vmem:[%s5 + $0x8] sm:$0xff] %v311
    %s314 = scalar_lea.vmem [#allocation2], 24
    %315 = vst.msk [vmem:[%s314] sm:$0x1] %vm36, 0.0
    %316 = vst.msk [vmem:[%s314 + $0x11] sm:$0x1] %vm36, 0.0
    %s317 = scalar_lea.vmem %s0, 16
    %v318 = vld [vmem:[%s317] sm:$0xff]
    %v319 = vld [vmem:[%s317 + $0x8] sm:$0xff]
    %320 = vst.msk [vmem:[%s314 + $0x1] sm:$0xff] %vm41, %v318
    %321 = vst.msk [vmem:[%s314 + $0x9] sm:$0xff] %vm41, %v319
    %v322 = vld [vmem:[%s314] sm:$0xff]
    %v323 = vld [vmem:[%s314 + $0x8] sm:$0xff]
    %v324 = vld [vmem:[#allocation4] sm:$0xff]
    %v325 = vld [vmem:[#allocation4 + $0x8] sm:$0xff]
    %v326 = vld [vmem:[#allocation4 + $0x10] sm:$0xff]
    %v327 = vld [vmem:[#allocation4 + $0x18] sm:$0xff]
    %v328 = vld [vmem:[#allocation4 + $0x20] sm:$0xff]
    %v329 = vld [vmem:[#allocation4 + $0x28] sm:$0xff]
    %v330 = vld [vmem:[#allocation4 + $0x30] sm:$0xff]
    %v331 = vld [vmem:[#allocation4 + $0x38] sm:$0xff]
    %v332 = vld [vmem:[%s314 + $0x1] sm:$0xff]
    %v333 = vld [vmem:[%s314 + $0x9] sm:$0xff]
    %v334 = vld [vmem:[%s56] sm:$0xff]
    %v335 = vld [vmem:[%s56 + $0x8] sm:$0xff]
    %v336 = vld [vmem:[%s56 + $0x10] sm:$0xff]
    %v337 = vld [vmem:[%s56 + $0x18] sm:$0xff]
    %v338 = vld [vmem:[%s56 + $0x20] sm:$0xff]
    %v339 = vld [vmem:[%s56 + $0x28] sm:$0xff]
    %v340 = vld [vmem:[%s56 + $0x30] sm:$0xff]
    %v341 = vld [vmem:[%s56 + $0x38] sm:$0xff]
    %v343 = vsel %vm41, %v332, 0
    %v346 = vsel %vm41, %v333, 0
    %348 = vmatpush.msra.mxu0 0.0
    %349 = vmatpush.msra.mxu0 0.0
    %350 = vmatpush.msra.mxu0 0.0
    %351 = vmatpush.msra.mxu0 0.0
    %352 = vmatpush.msra.mxu0 0.0
    %353 = vmatpush.msra.mxu0 0.0
    %354 = vmatpush.msra.mxu0 0.0
    %355 = vmatpush.msra.mxu0 0.0
    %356 = vmatpush.msra.mxu0 %v341
    %357 = vmatpush.msra.mxu0 %v340
    %358 = vmatpush.msra.mxu0 %v339
    %359 = vmatpush.msra.mxu0 %v338
    %360 = vmatpush.msra.mxu0 %v337
    %361 = vmatpush.msra.mxu0 %v336
    %362 = vmatpush.msra.mxu0 %v335
    %363 = vmatpush.msra.mxu0 %v334
    %364 = vmatmul.f32.gmra.mxu0 %v343
    %v365 = vpop.f32.mrf.mxu0
    %v366 = vadd.f32 0.0, %v365
    %367 = vmatmul.f32.gmra.mxu0 %v346
    %v368 = vpop.f32.mrf.mxu0
    %v369 = vadd.f32 0.0, %v368
    %370 = vdwg.mxu0
    %v372 = vsel %vm41, %v322, 0
    %v375 = vsel %vm41, %v323, 0
    %377 = vmatpush.msra.mxu0 0.0
    %378 = vmatpush.msra.mxu0 0.0
    %379 = vmatpush.msra.mxu0 0.0
    %380 = vmatpush.msra.mxu0 0.0
    %381 = vmatpush.msra.mxu0 0.0
    %382 = vmatpush.msra.mxu0 0.0
    %383 = vmatpush.msra.mxu0 0.0
    %384 = vmatpush.msra.mxu0 0.0
    %385 = vmatpush.msra.mxu0 %v331
    %386 = vmatpush.msra.mxu0 %v330
    %387 = vmatpush.msra.mxu0 %v329
    %388 = vmatpush.msra.mxu0 %v328
    %389 = vmatpush.msra.mxu0 %v327
    %390 = vmatpush.msra.mxu0 %v326
    %391 = vmatpush.msra.mxu0 %v325
    %392 = vmatpush.msra.mxu0 %v324
    %393 = vmatmul.f32.gmra.mxu0 %v372
    %v394 = vpop.f32.mrf.mxu0
    %v395 = vadd.f32 %v366, %v394
    %396 = vmatmul.f32.gmra.mxu0 %v375
    %v397 = vpop.f32.mrf.mxu0
    %v398 = vadd.f32 %v369, %v397
    %399 = vdwg.mxu0
    %v400 = vld [vmem:[%s314 + $0x2] sm:$0xff]
    %v401 = vld [vmem:[%s314 + $0xa] sm:$0xff]
    %v402 = vld [vmem:[%s125] sm:$0xff]
    %v403 = vld [vmem:[%s125 + $0x8] sm:$0xff]
    %v404 = vld [vmem:[%s125 + $0x10] sm:$0xff]
    %v405 = vld [vmem:[%s125 + $0x18] sm:$0xff]
    %v406 = vld [vmem:[%s125 + $0x20] sm:$0xff]
    %v407 = vld [vmem:[%s125 + $0x28] sm:$0xff]
    %v408 = vld [vmem:[%s125 + $0x30] sm:$0xff]
    %v409 = vld [vmem:[%s125 + $0x38] sm:$0xff]
    %v411 = vsel %vm41, %v400, 0
    %v414 = vsel %vm41, %v401, 0
    %416 = vmatpush.msra.mxu0 0.0
    %417 = vmatpush.msra.mxu0 0.0
    %418 = vmatpush.msra.mxu0 0.0
    %419 = vmatpush.msra.mxu0 0.0
    %420 = vmatpush.msra.mxu0 0.0
    %421 = vmatpush.msra.mxu0 0.0
    %422 = vmatpush.msra.mxu0 0.0
    %423 = vmatpush.msra.mxu0 0.0
    %424 = vmatpush.msra.mxu0 %v409
    %425 = vmatpush.msra.mxu0 %v408
    %426 = vmatpush.msra.mxu0 %v407
    %427 = vmatpush.msra.mxu0 %v406
    %428 = vmatpush.msra.mxu0 %v405
    %429 = vmatpush.msra.mxu0 %v404
    %430 = vmatpush.msra.mxu0 %v403
    %431 = vmatpush.msra.mxu0 %v402
    %432 = vmatmul.f32.gmra.mxu0 %v411
    %v433 = vpop.f32.mrf.mxu0
    %v434 = vadd.f32 0.0, %v433
    %435 = vmatmul.f32.gmra.mxu0 %v414
    %v436 = vpop.f32.mrf.mxu0
    %v437 = vadd.f32 0.0, %v436
    %438 = vdwg.mxu0
    %v439 = vadd.f32 %v395, %v434
    %v440 = vadd.f32 %v398, %v437
    %v441 = vld [vmem:[%s2] sm:$0x1]
    %v443 = vperm.slane %v441, 0
    %v445 = vadd.f32 %v439, %v443
    %v446 = vadd.f32 %v440, %v443
    %v447 = vmax.f32 %v445, 0.0
    %v448 = vmax.f32 %v446, 0.0
    %s449 = scalar_lea.vmem [#allocation3], 24
    %450 = vst [vmem:[%s449] sm:$0x1] 0.0
    %451 = vst [vmem:[%s449 + $0x11] sm:$0x1] 0.0
    %452 = vst [vmem:[%s449 + $0x1] sm:$0xff] %v447
    %453 = vst [vmem:[%s449 + $0x9] sm:$0xff] %v448
    %v454 = vld [vmem:[%s449] sm:$0xff]
    %v455 = vld [vmem:[%s449 + $0x8] sm:$0xff]
    %v456 = vld [vmem:[%s3] sm:$0xff]
    %v457 = vld [vmem:[%s3 + $0x8] sm:$0xff]
    %v458 = vld [vmem:[%s3 + $0x10] sm:$0xff]
    %v459 = vld [vmem:[%s3 + $0x18] sm:$0xff]
    %v460 = vld [vmem:[%s3 + $0x20] sm:$0xff]
    %v461 = vld [vmem:[%s3 + $0x28] sm:$0xff]
    %v462 = vld [vmem:[%s3 + $0x30] sm:$0xff]
    %v463 = vld [vmem:[%s3 + $0x38] sm:$0xff]
    %v464 = vld [vmem:[%s3 + $0x40] sm:$0xff]
    %v465 = vld [vmem:[%s3 + $0x48] sm:$0xff]
    %v466 = vld [vmem:[%s3 + $0x50] sm:$0xff]
    %v467 = vld [vmem:[%s3 + $0x58] sm:$0xff]
    %v468 = vld [vmem:[%s3 + $0x60] sm:$0xff]
    %v469 = vld [vmem:[%s3 + $0x68] sm:$0xff]
    %v470 = vld [vmem:[%s3 + $0x70] sm:$0xff]
    %v471 = vld [vmem:[%s3 + $0x78] sm:$0xff]
    %v472 = vld [vmem:[%s449 + $0x1] sm:$0xff]
    %v473 = vld [vmem:[%s449 + $0x9] sm:$0xff]
    %v474 = vld [vmem:[%s197] sm:$0xff]
    %v475 = vld [vmem:[%s197 + $0x8] sm:$0xff]
    %v476 = vld [vmem:[%s197 + $0x10] sm:$0xff]
    %v477 = vld [vmem:[%s197 + $0x18] sm:$0xff]
    %v478 = vld [vmem:[%s197 + $0x20] sm:$0xff]
    %v479 = vld [vmem:[%s197 + $0x28] sm:$0xff]
    %v480 = vld [vmem:[%s197 + $0x30] sm:$0xff]
    %v481 = vld [vmem:[%s197 + $0x38] sm:$0xff]
    %v482 = vld [vmem:[%s197 + $0x40] sm:$0xff]
    %v483 = vld [vmem:[%s197 + $0x48] sm:$0xff]
    %v484 = vld [vmem:[%s197 + $0x50] sm:$0xff]
    %v485 = vld [vmem:[%s197 + $0x58] sm:$0xff]
    %v486 = vld [vmem:[%s197 + $0x60] sm:$0xff]
    %v487 = vld [vmem:[%s197 + $0x68] sm:$0xff]
    %v488 = vld [vmem:[%s197 + $0x70] sm:$0xff]
    %v489 = vld [vmem:[%s197 + $0x78] sm:$0xff]
    %490 = vmatpush.msra.mxu0 %v489
    %491 = vmatpush.msra.mxu0 %v488
    %492 = vmatpush.msra.mxu0 %v487
    %493 = vmatpush.msra.mxu0 %v486
    %494 = vmatpush.msra.mxu0 %v485
    %495 = vmatpush.msra.mxu0 %v484
    %496 = vmatpush.msra.mxu0 %v483
    %497 = vmatpush.msra.mxu0 %v482
    %498 = vmatpush.msra.mxu0 %v481
    %499 = vmatpush.msra.mxu0 %v480
    %500 = vmatpush.msra.mxu0 %v479
    %501 = vmatpush.msra.mxu0 %v478
    %502 = vmatpush.msra.mxu0 %v477
    %503 = vmatpush.msra.mxu0 %v476
    %504 = vmatpush.msra.mxu0 %v475
    %505 = vmatpush.msra.mxu0 %v474
    %506 = vmatmul.f32.gmra.mxu0 %v472
    %v507 = vpop.f32.mrf.mxu0
    %v508 = vadd.f32 0.0, %v507
    %509 = vmatmul.f32.gmra.mxu0 %v473
    %v510 = vpop.f32.mrf.mxu0
    %v511 = vadd.f32 0.0, %v510
    %512 = vdwg.mxu0
    %513 = vmatpush.msra.mxu0 %v471
    %514 = vmatpush.msra.mxu0 %v470
    %515 = vmatpush.msra.mxu0 %v469
    %516 = vmatpush.msra.mxu0 %v468
    %517 = vmatpush.msra.mxu0 %v467
    %518 = vmatpush.msra.mxu0 %v466
    %519 = vmatpush.msra.mxu0 %v465
    %520 = vmatpush.msra.mxu0 %v464
    %521 = vmatpush.msra.mxu0 %v463
    %522 = vmatpush.msra.mxu0 %v462
    %523 = vmatpush.msra.mxu0 %v461
    %524 = vmatpush.msra.mxu0 %v460
    %525 = vmatpush.msra.mxu0 %v459
    %526 = vmatpush.msra.mxu0 %v458
    %527 = vmatpush.msra.mxu0 %v457
    %528 = vmatpush.msra.mxu0 %v456
    %529 = vmatmul.f32.gmra.mxu0 %v454
    %v530 = vpop.f32.mrf.mxu0
    %v531 = vadd.f32 %v508, %v530
    %532 = vmatmul.f32.gmra.mxu0 %v455
    %v533 = vpop.f32.mrf.mxu0
    %v534 = vadd.f32 %v511, %v533
    %535 = vdwg.mxu0
    %v536 = vld [vmem:[%s449 + $0x2] sm:$0xff]
    %v537 = vld [vmem:[%s449 + $0xa] sm:$0xff]
    %v538 = vld [vmem:[%s262] sm:$0xff]
    %v539 = vld [vmem:[%s262 + $0x8] sm:$0xff]
    %v540 = vld [vmem:[%s262 + $0x10] sm:$0xff]
    %v541 = vld [vmem:[%s262 + $0x18] sm:$0xff]
    %v542 = vld [vmem:[%s262 + $0x20] sm:$0xff]
    %v543 = vld [vmem:[%s262 + $0x28] sm:$0xff]
    %v544 = vld [vmem:[%s262 + $0x30] sm:$0xff]
    %v545 = vld [vmem:[%s262 + $0x38] sm:$0xff]
    %v546 = vld [vmem:[%s262 + $0x40] sm:$0xff]
    %v547 = vld [vmem:[%s262 + $0x48] sm:$0xff]
    %v548 = vld [vmem:[%s262 + $0x50] sm:$0xff]
    %v549 = vld [vmem:[%s262 + $0x58] sm:$0xff]
    %v550 = vld [vmem:[%s262 + $0x60] sm:$0xff]
    %v551 = vld [vmem:[%s262 + $0x68] sm:$0xff]
    %v552 = vld [vmem:[%s262 + $0x70] sm:$0xff]
    %v553 = vld [vmem:[%s262 + $0x78] sm:$0xff]
    %554 = vmatpush.msra.mxu0 %v553
    %555 = vmatpush.msra.mxu0 %v552
    %556 = vmatpush.msra.mxu0 %v551
    %557 = vmatpush.msra.mxu0 %v550
    %558 = vmatpush.msra.mxu0 %v549
    %559 = vmatpush.msra.mxu0 %v548
    %560 = vmatpush.msra.mxu0 %v547
    %561 = vmatpush.msra.mxu0 %v546
    %562 = vmatpush.msra.mxu0 %v545
    %563 = vmatpush.msra.mxu0 %v544
    %564 = vmatpush.msra.mxu0 %v543
    %565 = vmatpush.msra.mxu0 %v542
    %566 = vmatpush.msra.mxu0 %v541
    %567 = vmatpush.msra.mxu0 %v540
    %568 = vmatpush.msra.mxu0 %v539
    %569 = vmatpush.msra.mxu0 %v538
    %570 = vmatmul.f32.gmra.mxu0 %v536
    %v571 = vpop.f32.mrf.mxu0
    %v572 = vadd.f32 0.0, %v571
    %573 = vmatmul.f32.gmra.mxu0 %v537
    %v574 = vpop.f32.mrf.mxu0
    %v575 = vadd.f32 0.0, %v574
    %576 = vdwg.mxu0
    %v577 = vadd.f32 %v531, %v572
    %v578 = vadd.f32 %v534, %v575
    %v579 = vld [vmem:[%s4] sm:$0x1]
    %v581 = vperm.slane %v579, 0
    %v583 = vadd.f32 %v577, %v581
    %v584 = vadd.f32 %v578, %v581
    %v585 = vmax.f32 %v583, 0.0
    %v586 = vmax.f32 %v584, 0.0
    %s587 = scalar_lea.vmem %s5, 16
    %588 = vst [vmem:[%s587] sm:$0xff] %v585
    %589 = vst [vmem:[%s587 + $0x8] sm:$0xff] %v586
    // Predicated region
    $region26: #{double_conv_forward.1} parent=1 // pred_check
      _
    $region27: #{double_conv_forward.1} parent=1 // pred_check_branch
      %591 = sbr.rel (0) target = $region29
    $region28: #{double_conv_forward.1} parent=1 // pred_region
      _
    $region29: #{double_conv_forward.1} parent=1 // pred_fallthru
      _
    // Predicated region
    $region30: #{double_conv_forward.1} parent=1 // pred_check
      _
    $region31: #{double_conv_forward.1} parent=1 // pred_check_branch
      %593 = sbr.rel (0) target = $region33
    $region32: #{double_conv_forward.1} parent=1 // pred_region
      _
    $region33: #{double_conv_forward.1} parent=1 // pred_fallthru
      _
    %594 = vsyncpa [#allocation5], 1

</llo_original>
